<compile_context>
chip_gen: v7x
topology: tpu7x:2x2x1
jax: 0.10.0
libtpu: 0.0.40
codegen_flags: <defaults>
</compile_context>

<pallas_src>
import functools

import jax
import jax.numpy as jnp
from jax.experimental import pallas as pl
from jax.experimental.pallas import tpu as pltpu


# ---------------------------------------------------------------------------
# helpers
# ---------------------------------------------------------------------------
def _pick_tile(dim: int, preferred: int, align: int) -> int:
    """Largest tile <= preferred that divides `dim` and is a multiple of `align`.
    Small dims (<= preferred) use the full dim (always a legal block shape).
    Never silently falls back to the full dim for large dims."""
    if dim <= preferred:
        return dim
    t = (preferred // align) * align
    while t >= align:
        if dim % t == 0:
            return t
        t -= align
    # TODO(synk): pad-and-mask ragged dims instead of failing hard.
    raise ValueError(
        f"no tile <= {preferred} (multiple of {align}) divides dim={dim}; "
        f"pad the dimension to a multiple of {align}")


def _vmem_cap_bytes(headroom=8 << 20, fallback=64 << 20) -> int:
    """Physical VMEM of the local chip minus headroom (64 MiB fallback: safe on v5e/v6e/v7x)."""
    try:
        cap = int(pltpu.get_tpu_info().vmem_capacity_bytes)
    except Exception:  # best-effort query; fall back conservatively
        cap = fallback
    return max(cap - headroom, 16 << 20)


def _vmem_limit(est_bytes: int) -> int:
    want = int(1.25 * est_bytes) + (4 << 20)
    return int(min(_vmem_cap_bytes(), max(want, 16 << 20)))


# ---------------------------------------------------------------------------
# RMSNorm kernels (optionally fused with the residual add, like vLLM RMSNorm)
# ---------------------------------------------------------------------------
def _rmsnorm_kernel(x_ref, w_ref, o_ref, *, eps):
    x = x_ref[...].astype(jnp.float32)                          # (tm, H)
    var = jnp.mean(x * x, axis=-1, keepdims=True)
    inv = jax.lax.rsqrt(var + eps)
    o_ref[...] = (x * inv * w_ref[...].astype(jnp.float32)).astype(o_ref.dtype)


def _add_rmsnorm_kernel(x_ref, res_ref, w_ref, o_ref, res_out_ref, *, eps):
    s = x_ref[...].astype(jnp.float32) + res_ref[...].astype(jnp.float32)
    res_out_ref[...] = s.astype(res_out_ref.dtype)              # residual stays f32
    var = jnp.mean(s * s, axis=-1, keepdims=True)
    inv = jax.lax.rsqrt(var + eps)
    o_ref[...] = (s * inv * w_ref[...].astype(jnp.float32)).astype(o_ref.dtype)


def rmsnorm(x, weight, *, eps=1e-6, out_dtype=jnp.bfloat16, token_tile=None):
    T, H = x.shape
    tm = token_tile or _pick_tile(T, 256, 8)
    assert T % tm == 0
    est = 2 * tm * H * (jnp.dtype(x.dtype).itemsize + jnp.dtype(out_dtype).itemsize) + 4 * H
    return pl.pallas_call(
        functools.partial(_rmsnorm_kernel, eps=eps),
        out_shape=jax.ShapeDtypeStruct((T, H), out_dtype),
        grid_spec=pltpu.PrefetchScalarGridSpec(
            num_scalar_prefetch=0,
            grid=(T // tm,),
            in_specs=[pl.BlockSpec((tm, H), lambda i: (i, 0)),
                      pl.BlockSpec((1, H), lambda i: (0, 0))],
            out_specs=pl.BlockSpec((tm, H), lambda i: (i, 0))),
        compiler_params=pltpu.CompilerParams(
            dimension_semantics=("parallel",),
            vmem_limit_bytes=_vmem_limit(est)),
    )(x, weight.reshape(1, H))


def add_rmsnorm(x, residual, weight, *, eps=1e-6, out_dtype=jnp.bfloat16,
                res_dtype=jnp.float32, token_tile=None):
    T, H = x.shape
    tm = token_tile or _pick_tile(T, 256, 8)
    assert T % tm == 0
    est = 2 * tm * H * (jnp.dtype(x.dtype).itemsize + jnp.dtype(residual.dtype).itemsize
                        + jnp.dtype(out_dtype).itemsize + jnp.dtype(res_dtype).itemsize) + 4 * H
    out, res = pl.pallas_call(
        functools.partial(_add_rmsnorm_kernel, eps=eps),
        out_shape=(jax.ShapeDtypeStruct((T, H), out_dtype),
                   jax.ShapeDtypeStruct((T, H), res_dtype)),
        grid_spec=pltpu.PrefetchScalarGridSpec(
            num_scalar_prefetch=0,
            grid=(T // tm,),
            in_specs=[pl.BlockSpec((tm, H), lambda i: (i, 0)),
                      pl.BlockSpec((tm, H), lambda i: (i, 0)),
                      pl.BlockSpec((1, H), lambda i: (0, 0))],
            out_specs=[pl.BlockSpec((tm, H), lambda i: (i, 0)),
                       pl.BlockSpec((tm, H), lambda i: (i, 0))]),
        compiler_params=pltpu.CompilerParams(
            dimension_semantics=("parallel",),
            vmem_limit_bytes=_vmem_limit(est)),
    )(x, residual, weight.reshape(1, H))
    return out, res


# ---------------------------------------------------------------------------
# Linear projection kernels (qkv_proj with bias, o_proj without) — weight tiled
# along the output dim so it is streamed (double-buffered), never fully resident.
# ---------------------------------------------------------------------------
def _linear_kernel(x_ref, w_ref, o_ref):
    o_ref[...] = jnp.dot(x_ref[...], w_ref[...],
                         preferred_element_type=jnp.float32).astype(o_ref.dtype)


def _linear_bias_kernel(x_ref, w_ref, b_ref, o_ref):
    acc = jnp.dot(x_ref[...], w_ref[...], preferred_element_type=jnp.float32)
    o_ref[...] = (acc + b_ref[...]).astype(o_ref.dtype)


def linear(x, w_t, bias=None, *, token_tile=None, out_tile=None, out_dtype=None):
    """x: [T, K]; w_t: [K, N] (pre-transposed, bf16); bias: [1, N] f32 or None.
    grid = (T//tm, N//tn): weight blocks of (K, tn) are streamed over the output dim."""
    T, K = x.shape
    N = w_t.shape[1]
    cdt = w_t.dtype
    out_dtype = out_dtype or cdt                   # bf16 writeback by default
    x = x.astype(cdt)
    tm = token_tile or _pick_tile(T, 512, 8)
    tn = out_tile or _pick_tile(N, 512, 128)
    assert T % tm == 0 and N % tn == 0
    wb = jnp.dtype(cdt).itemsize
    ob = jnp.dtype(out_dtype).itemsize
    est = 2 * (tm * K * wb + K * tn * wb + tm * tn * ob) + 2 * tn * 4
    cost = pl.CostEstimate(flops=2 * T * K * N, transcendentals=0,
                           bytes_accessed=int(T * K * wb + (T // tm) * K * N * wb + T * N * ob))

    if bias is not None:
        kernel = _linear_bias_kernel
        in_specs = [pl.BlockSpec((tm, K), lambda i, j: (i, 0)),
                    pl.BlockSpec((K, tn), lambda i, j: (0, j)),
                    pl.BlockSpec((1, tn), lambda i, j: (0, j))]
        args = (x, w_t, bias.reshape(1, N).astype(jnp.float32))
    else:
        kernel = _linear_kernel
        in_specs = [pl.BlockSpec((tm, K), lambda i, j: (i, 0)),
                    pl.BlockSpec((K, tn), lambda i, j: (0, j))]
        args = (x, w_t)

    return pl.pallas_call(
        kernel,
        out_shape=jax.ShapeDtypeStruct((T, N), out_dtype),
        grid_spec=pltpu.PrefetchScalarGridSpec(
            num_scalar_prefetch=0,
            grid=(T // tm, N // tn),
            in_specs=in_specs,
            out_specs=pl.BlockSpec((tm, tn), lambda i, j: (i, j))),
        compiler_params=pltpu.CompilerParams(
            dimension_semantics=("parallel", "parallel"),
            vmem_limit_bytes=_vmem_limit(est)),
        cost_estimate=cost,
    )(*args)


# ---------------------------------------------------------------------------
# Flash-style causal self-attention (prefill, no KV cache)
# ---------------------------------------------------------------------------
# TODO(synk): vLLM's paged kv_cache + AttentionMetadata (decode / paged-attention path)
# has no clean Pallas equivalent here; this is the cache-free causal prefill attention.
def _flash_attn_kernel(q_ref, k_ref, v_ref, o_ref, m_sc, l_sc, acc_sc, *, scale):
    qi = pl.program_id(2)
    ki = pl.program_id(3)

    @pl.when(ki == 0)
    def _init():
        m_sc[...] = jnp.full_like(m_sc, -jnp.inf)
        l_sc[...] = jnp.zeros_like(l_sc)
        acc_sc[...] = jnp.zeros_like(acc_sc)

    def _block(apply_mask):
        q = q_ref[...]                                            # (tq, d)  bf16
        k = k_ref[...]                                            # (tkv, d) bf16
        s = jax.lax.dot_general(q, k, (((1,), (1,)), ((), ())),   # q @ k^T
                                preferred_element_type=jnp.float32) * scale
        if apply_mask:
            # only the diagonal block needs masking; with tq == tkv the global
            # row/col offsets cancel, so a local iota compare suffices.
            lr = jax.lax.broadcasted_iota(jnp.int32, s.shape, 0)
            lc = jax.lax.broadcasted_iota(jnp.int32, s.shape, 1)
            s = jnp.where(lr >= lc, s, -1e30)
        m_prev = m_sc[...]
        m_new = jnp.maximum(m_prev, jnp.max(s, axis=-1, keepdims=True))
        alpha = jnp.exp(m_prev - m_new)
        p = jnp.exp(s - m_new)
        l_sc[...] = alpha * l_sc[...] + jnp.sum(p, axis=-1, keepdims=True)
        acc_sc[...] = alpha * acc_sc[...] + jnp.dot(
            p.astype(v_ref.dtype), v_ref[...], preferred_element_type=jnp.float32)
        m_sc[...] = m_new

    @pl.when(ki < qi)            # fully visible kv block: no mask work
    def _off_diag():
        _block(apply_mask=False)

    @pl.when(ki == qi)           # diagonal block: local causal mask
    def _diag():
        _block(apply_mask=True)

    # kv blocks with ki > qi are entirely above the causal diagonal: skipped.

    @pl.when(ki == pl.num_programs(3) - 1)
    def _finalize():
        o_ref[...] = (acc_sc[...] * pl.reciprocal(l_sc[...], approx=True)
                      ).astype(o_ref.dtype)


def flash_attention(q, k, v, *, num_heads, num_kv_heads, scale,
                    block_q=None, block_kv=None, out_dtype=None):
    """q: (B, S, nh*d); k, v: (B, S, nkv*d), all in the MXU compute dtype.
    GQA is expressed in the K/V index_map (kv head = h // rep) — no jnp.repeat,
    no head-transposes; output is (B, S, nh*d), directly consumable by o_proj."""
    B, S, q_size = q.shape
    d = q_size // num_heads
    rep = num_heads // num_kv_heads
    if num_heads > 1 and d % 128 != 0:
        raise ValueError(f"flash_attention needs head_dim % 128 == 0 for lane-aligned "
                         f"per-head blocks; got head_dim={d}")
    out_dtype = out_dtype or q.dtype
    tq = block_q or _pick_tile(S, 256, 128)     # >=256-multiples feed the 256-wide MXU
    tkv = block_kv or tq
    assert tq == tkv, "diagonal-block skipping assumes block_q == block_kv"
    assert S % tq == 0

    grid = (B, num_heads, S // tq, S // tkv)
    return pl.pallas_call(
        functools.partial(_flash_attn_kernel, scale=scale),
        out_shape=jax.ShapeDtypeStruct((B, S, q_size), out_dtype),
        grid_spec=pltpu.PrefetchScalarGridSpec(
            num_scalar_prefetch=0,
            grid=grid,
            in_specs=[
                pl.BlockSpec((None, tq, d), lambda b, h, qi, ki: (b, qi, h)),
                pl.BlockSpec((None, tkv, d), lambda b, h, qi, ki: (b, ki, h // rep)),
                pl.BlockSpec((None, tkv, d), lambda b, h, qi, ki: (b, ki, h // rep)),
            ],
            out_specs=pl.BlockSpec((None, tq, d), lambda b, h, qi, ki: (b, qi, h)),
            scratch_shapes=[pltpu.VMEM((tq, 1), jnp.float32),     # m
                            pltpu.VMEM((tq, 1), jnp.float32),     # l
                            pltpu.VMEM((tq, d), jnp.float32)]),   # acc
        compiler_params=pltpu.CompilerParams(
            dimension_semantics=("parallel", "parallel", "parallel", "arbitrary")),
    )(q, k, v)


# ---------------------------------------------------------------------------
# Gated MLP kernel: intermediate-dim reduction grid axis + f32 VMEM accumulator
# ---------------------------------------------------------------------------
def _mlp_kernel(x_ref, wg_ref, wu_ref, wd_ref, o_ref, acc_ref):
    k = pl.program_id(1)

    @pl.when(k == 0)
    def _init():
        acc_ref[...] = jnp.zeros_like(acc_ref)

    x = x_ref[...]                                                      # (tm, H) bf16
    gate = jnp.dot(x, wg_ref[...], preferred_element_type=jnp.float32)  # (tm, tk)
    up = jnp.dot(x, wu_ref[...], preferred_element_type=jnp.float32)    # (tm, tk)
    act = (gate * jax.nn.sigmoid(gate)) * up                            # SiLU*up, f32
    acc_ref[...] += jnp.dot(act.astype(wd_ref.dtype), wd_ref[...],
                            preferred_element_type=jnp.float32)         # (tm, H) f32

    @pl.when(k == pl.num_programs(1) - 1)
    def _finalize():
        o_ref[...] = acc_ref[...].astype(o_ref.dtype)


def tinyllm_mlp(x, w_gate_t, w_up_t, w_down_t, *, token_tile=None, inter_tile=None,
                out_dtype=None, vmem_budget_bytes=None):
    """x: [T, H]; w_gate_t / w_up_t: [H, I]; w_down_t: [I, H] — pre-transposed, pre-split
    and pre-cast (bf16) once by prepare_layer_params."""
    T, H = x.shape
    I = w_gate_t.shape[1]
    cdt = w_gate_t.dtype
    out_dtype = out_dtype or cdt                   # bf16 writeback by default
    x = x.astype(cdt)

    # tm=512 keeps the MLP MXU-bound on v7x (~310 FLOP/B crossover) and close on v6e
    # (pass token_tile=1024 there); tk=512 bounds the streamed weight working set so the
    # whole kernel stays ~48 MiB at H=4096 bf16 -> fits v7x's 64 MiB VMEM.
    tm = token_tile or _pick_tile(T, 512, 128)
    tk = inter_tile or _pick_tile(I, 512, 128)
    assert T % tm == 0 and I % tk == 0, (T, tm, I, tk)
    grid = (T // tm, I // tk)

    wb = jnp.dtype(cdt).itemsize
    ob = jnp.dtype(out_dtype).itemsize
    est = (2 * tm * H * wb                 # x tile (double-buffered)
           + 2 * 2 * H * tk * wb           # gate + up weight tiles (streamed over k)
           + 2 * tk * H * wb               # down weight tile (streamed over k)
           + 2 * tm * H * ob               # output tile
           + tm * H * 4)                   # f32 accumulator scratch
    vmem_limit = vmem_budget_bytes or _vmem_limit(est)

    cost = pl.CostEstimate(
        flops=2 * T * H * 3 * I,
        transcendentals=T * I,
        bytes_accessed=int(T * H * (wb + ob) + grid[0] * 3 * H * I * wb))

    return pl.pallas_call(
        _mlp_kernel,
        out_shape=jax.ShapeDtypeStruct((T, H), out_dtype),
        grid_spec=pltpu.PrefetchScalarGridSpec(
            num_scalar_prefetch=0,
            grid=grid,
            in_specs=[
                pl.BlockSpec((tm, H), lambda i, k: (i, 0)),   # x (resident across k)
                pl.BlockSpec((H, tk), lambda i, k: (0, k)),   # W_gate^T, streamed over k
                pl.BlockSpec((H, tk), lambda i, k: (0, k)),   # W_up^T,   streamed over k
                pl.BlockSpec((tk, H), lambda i, k: (k, 0)),   # W_down^T, streamed over k
            ],
            out_specs=pl.BlockSpec((tm, H), lambda i, k: (i, 0)),
            scratch_shapes=[pltpu.VMEM((tm, H), jnp.float32)],
        ),
        compiler_params=pltpu.CompilerParams(
            dimension_semantics=("parallel", "arbitrary"),
            vmem_limit_bytes=int(vmem_limit)),
        cost_estimate=cost,
    )(x, w_gate_t, w_up_t, w_down_t)


# ---------------------------------------------------------------------------
# Decoder-layer parameters (torch Linear convention: weight is [out, in])
# ---------------------------------------------------------------------------
def init_layer_params(key, config):
    H = config["hidden_size"]
    nh = config["num_attention_heads"]
    nkv = config["num_key_value_heads"]
    I = config["intermediate_size"]
    d = H // nh
    q_size, kv_size = nh * d, nkv * d
    ks = jax.random.split(key, 5)
    s = 0.02
    return dict(
        input_norm_w=jnp.ones((H,), jnp.float32),
        post_norm_w=jnp.ones((H,), jnp.float32),
        w_qkv=jax.random.normal(ks[0], (q_size + 2 * kv_size, H), jnp.float32) * s,
        b_qkv=jax.random.normal(ks[1], (q_size + 2 * kv_size,), jnp.float32) * s,
        w_o=jax.random.normal(ks[2], (H, q_size), jnp.float32) * s,
        w_gate_up=jax.random.normal(ks[3], (2 * I, H), jnp.float32) * s,
        w_down=jax.random.normal(ks[4], (H, I), jnp.float32) * s,
    )


def prepare_layer_params(p, compute_dtype=jnp.bfloat16):
    """One-time weight prep: transpose to [in, out], split gate/up, cast to bf16."""
    I = p["w_down"].shape[1]
    w_gate = p["w_gate_up"][:I]          # [I, H]
    w_up = p["w_gate_up"][I:]            # [I, H]
    return dict(
        input_norm_w=p["input_norm_w"].astype(jnp.float32),
        post_norm_w=p["post_norm_w"].astype(jnp.float32),
        w_qkv_t=jnp.asarray(p["w_qkv"].T, compute_dtype),       # [H, q+2kv]
        b_qkv=jnp.asarray(p["b_qkv"].reshape(1, -1), jnp.float32),
        w_o_t=jnp.asarray(p["w_o"].T, compute_dtype),           # [q_size, H]
        w_gate_t=jnp.asarray(w_gate.T, compute_dtype),          # [H, I]
        w_up_t=jnp.asarray(w_up.T, compute_dtype),              # [H, I]
        w_down_t=jnp.asarray(p["w_down"].T, compute_dtype),     # [I, H]
    )


# ---------------------------------------------------------------------------
# Attention + decoder layer (Pallas path)
# ---------------------------------------------------------------------------
def apply_rope(q, k, positions, head_dim, base):
    """NeoX-style rotary embedding (vLLM default get_rope). Elementwise glue."""
    half = head_dim // 2
    inv_freq = 1.0 / (base ** (jnp.arange(half, dtype=jnp.float32) / half))
    angles = positions.astype(jnp.float32)[..., None] * inv_freq        # (B, S, half)
    cos = jnp.cos(angles)[..., None, :]                                 # (B, S, 1, half)
    sin = jnp.sin(angles)[..., None, :]

    def rot(x):
        x1, x2 = x[..., :half], x[..., half:]
        return jnp.concatenate([x1 * cos - x2 * sin, x2 * cos + x1 * sin], axis=-1)

    return rot(q), rot(k)


def tinyllm_attention(positions, x, params, config, B, S, *, attn_block_q=None):
    """x: (T, H) normalized hidden (compute dtype). Returns (T, H) in the compute dtype."""
    H = config["hidden_size"]
    nh = config["num_attention_heads"]
    nkv = config["num_key_value_heads"]
    d = H // nh
    q_size, kv_size = nh * d, nkv * d
    T = B * S
    cdt = params["w_qkv_t"].dtype

    qkv = linear(x, params["w_qkv_t"], params["b_qkv"])          # (T, q+2kv) bf16
    q = qkv[:, :q_size].reshape(B, S, nh, d)
    k = qkv[:, q_size:q_size + kv_size].reshape(B, S, nkv, d)
    v = qkv[:, q_size + kv_size:].reshape(B, S, kv_size)          # stays bf16
    q, k = apply_rope(q, k, positions, d, config["rope_theta"])
    q = q.reshape(B, S, q_size).astype(cdt)                       # free reshapes
    k = k.reshape(B, S, kv_size).astype(cdt)

    attn = flash_attention(q, k, v, num_heads=nh, num_kv_heads=nkv,
                           scale=d ** -0.5, block_q=attn_block_q)  # (B, S, q_size)
    return linear(attn.reshape(T, q_size), params["w_o_t"])        # (T, H)


def tinyllm_decoder_layer(positions, hidden_states, params, config, residual=None,
                          *, mlp_token_tile=None, mlp_inter_tile=None,
                          attn_block_q=None):
    """Pallas forward of TinyllmDecoderLayer. Returns (hidden_states, residual)."""
    B, S, H = hidden_states.shape
    T = B * S
    eps = config["rms_norm_eps"]
    x = hidden_states.reshape(T, H)

    if residual is None:
        residual_flat = x.astype(jnp.float32)
        h = rmsnorm(x, params["input_norm_w"], eps=eps)
    else:
        h, residual_flat = add_rmsnorm(x, residual.reshape(T, H),
                                       params["input_norm_w"], eps=eps)

    attn_out = tinyllm_attention(positions, h, params, config, B, S,
                                 attn_block_q=attn_block_q)

    h, residual_flat = add_rmsnorm(attn_out, residual_flat,
                                   params["post_norm_w"], eps=eps)

    mlp_out = tinyllm_mlp(h, params["w_gate_t"], params["w_up_t"], params["w_down_t"],
                          token_tile=mlp_token_tile, inter_tile=mlp_inter_tile)
    return mlp_out.reshape(B, S, H), residual_flat.reshape(B, S, H)


# ---------------------------------------------------------------------------
# Pure-JAX f32 reference (mirrors the PyTorch module semantics)
# ---------------------------------------------------------------------------
def decoder_layer_ref(positions, hidden_states, p, config, residual=None):
    B, S, H = hidden_states.shape
    eps = config["rms_norm_eps"]
    nh = config["num_attention_heads"]
    nkv = config["num_key_value_heads"]
    d = H // nh
    q_size, kv_size = nh * d, nkv * d
    I = p["w_down"].shape[1]

    def rms(x, w):
        var = jnp.mean(x * x, axis=-1, keepdims=True)
        return x * jax.lax.rsqrt(var + eps) * w

    x = hidden_states.astype(jnp.float32)
    if residual is None:
        residual = x
        h = rms(x, p["input_norm_w"])
    else:
        x = x + residual
        residual = x
        h = rms(x, p["input_norm_w"])

    qkv = h @ p["w_qkv"].T + p["b_qkv"]
    q = qkv[..., :q_size].reshape(B, S, nh, d)
    k = qkv[..., q_size:q_size + kv_size].reshape(B, S, nkv, d)
    v = qkv[..., q_size + kv_size:].reshape(B, S, nkv, d)
    q, k = apply_rope(q, k, positions, d, config["rope_theta"])
    rep = nh // nkv
    k = jnp.repeat(k, rep, axis=2)
    v = jnp.repeat(v, rep, axis=2)
    s = jnp.einsum("bqhd,bkhd->bhqk", q, k) * (d ** -0.5)
    mask = jnp.tril(jnp.ones((S, S), dtype=bool))
    s = jnp.where(mask, s, -1e30)
    pw = jax.nn.softmax(s, axis=-1)
    attn = jnp.einsum("bhqk,bkhd->bqhd", pw, v).reshape(B, S, q_size)
    attn = attn @ p["w_o"].T

    x = attn + residual
    residual = x
    h = rms(x, p["post_norm_w"])

    gu = h @ p["w_gate_up"].T
    g, u = gu[..., :I], gu[..., I:]
    out = (g * jax.nn.sigmoid(g) * u) @ p["w_down"].T
    return out, residual


if __name__ == "__main__":
    # head_dim = 128 (lane-aligned per-head blocks), GQA with 2 query heads per kv head.
    config = dict(hidden_size=256, num_attention_heads=2, num_key_value_heads=1,
                  intermediate_size=512, rms_norm_eps=1e-6, rope_theta=10000.0)
    batch, seq = 2, 128

    key = jax.random.PRNGKey(0)
    kp, kx = jax.random.split(key)
    raw_params = init_layer_params(kp, config)
    params = prepare_layer_params(raw_params)     # one-time transpose / split / bf16 cast

    hidden_states = jax.random.normal(kx, (batch, seq, config["hidden_size"]),
                                      dtype=jnp.float32)
    positions = jnp.broadcast_to(jnp.arange(seq, dtype=jnp.int32), (batch, seq))

    # Two stacked layers sharing weights: exercises both the residual=None and the fused
    # add+norm path.  attn_block_q=64 and mlp_inter_tile=128 force multi-block flash
    # attention (diagonal masking + above-diagonal skipping + GQA index_map) and a
    # multi-step MLP reduction even at these small shapes.
    h1, r1 = tinyllm_decoder_layer(positions, hidden_states, params, config,
                                   residual=None, attn_block_q=64, mlp_inter_tile=128)
    h2, r2 = tinyllm_decoder_layer(positions, h1, params, config,
                                   residual=r1, attn_block_q=64, mlp_inter_tile=128)
    jax.block_until_ready((h2, r2))

    rh1, rr1 = decoder_layer_ref(positions, hidden_states, raw_params, config, None)
    rh2, rr2 = decoder_layer_ref(positions, rh1, raw_params, config, rr1)

    # bf16 MXU operands + bf16 activation writebacks (f32 accumulation) -> loose tolerance.
    def _check(a, b, name):
        a32 = a.astype(jnp.float32)
        err = float(jnp.max(jnp.abs(a32 - b)))
        assert jnp.allclose(a32, b, atol=4e-2, rtol=4e-2), (name, err)

    _check(h1, rh1, "layer1 hidden")
    _check(r1, rr1, "layer1 residual")
    _check(h2, rh2, "layer2 hidden")
    _check(r2, rr2, "layer2 residual")

    print("KERNEL_OK")
</pallas_src>

<mosaic_0001>
module attributes {stable_mosaic.version = 11 : i64} {
  func.func @_rmsnorm_kernel(%arg0: i32, %arg1: memref<256x256xf32, #tpu.memory_space<vmem>>, %arg2: memref<1x256xf32, #tpu.memory_space<vmem>>, %arg3: memref<256x256xbf16, #tpu.memory_space<vmem>>) attributes {dimension_semantics = [#tpu.dimension_semantics<parallel>], iteration_bounds = array<i64: 1>, scalar_prefetch = 0 : i64, scratch_operands = 0 : i64, tpu.core_type = #tpu.core_type<tc>, window_params = [{transform_indices = @transform_0, window_bounds = array<i64: 256, 256>}, {pipeline_mode = #tpu.pipeline_mode<synchronous>, transform_indices = @transform_1, window_bounds = array<i64: 1, 256>}, {transform_indices = @transform_2, window_bounds = array<i64: 256, 256>}]} {
    %c0 = arith.constant 0 : index
    %c0_0 = arith.constant 0 : index
    %0 = vector.load %arg1[%c0, %c0_0] : memref<256x256xf32, #tpu.memory_space<vmem>>, vector<256x256xf32>
    %1 = arith.mulf %0, %0 : vector<256x256xf32>
    %cst = arith.constant dense<0.000000e+00> : vector<256xf32>
    %2 = vector.multi_reduction <add>, %1, %cst [1] : vector<256x256xf32> to vector<256xf32>
    %3 = vector.shape_cast %2 : vector<256xf32> to vector<256x1xf32>
    %cst_1 = arith.constant 2.560000e+02 : f32
    %4 = vector.broadcast %cst_1 : f32 to vector<256x1xf32>
    %5 = arith.divf %3, %4 : vector<256x1xf32>
    %cst_2 = arith.constant 9.99999997E-7 : f32
    %6 = vector.broadcast %cst_2 : f32 to vector<256x1xf32>
    %7 = arith.addf %5, %6 : vector<256x1xf32>
    %8 = math.rsqrt %7 : vector<256x1xf32>
    %9 = vector.broadcast %8 : vector<256x1xf32> to vector<256x256xf32>
    %10 = arith.mulf %0, %9 : vector<256x256xf32>
    %c0_3 = arith.constant 0 : index
    %c0_4 = arith.constant 0 : index
    %11 = vector.load %arg2[%c0_3, %c0_4] : memref<1x256xf32, #tpu.memory_space<vmem>>, vector<1x256xf32>
    %12 = vector.broadcast %11 : vector<1x256xf32> to vector<256x256xf32>
    %13 = arith.mulf %10, %12 : vector<256x256xf32>
    %14 = arith.truncf %13 : vector<256x256xf32> to vector<256x256xbf16>
    %c0_5 = arith.constant 0 : index
    %c0_6 = arith.constant 0 : index
    %15 = vector.load %arg3[%c0_5, %c0_6] : memref<256x256xbf16, #tpu.memory_space<vmem>>, vector<256x256xbf16>
    tpu.vector_store %arg3[%c0_5, %c0_6], %14 {strides = array<i32>} : memref<256x256xbf16, #tpu.memory_space<vmem>>, vector<256x256xbf16>,
    return
  }
  func.func @transform_0(%arg0: i32) -> (i32, i32) {
    %c0_i32 = arith.constant 0 : i32
    %c0_i32_0 = arith.constant 0 : i32
    return %arg0, %c0_i32 : i32, i32
  }
  func.func @transform_1(%arg0: i32) -> (i32, i32) {
    %c0_i32 = arith.constant 0 : i32
    %c0_i32_0 = arith.constant 0 : i32
    %c0_i32_1 = arith.constant 0 : i32
    return %c0_i32, %c0_i32_0 : i32, i32
  }
  func.func @transform_2(%arg0: i32) -> (i32, i32) {
    %c0_i32 = arith.constant 0 : i32
    %c0_i32_0 = arith.constant 0 : i32
    return %arg0, %c0_i32 : i32, i32
  }
}

</mosaic_0001>

<llo_original>
// kernel: tpu_custom_call.1
$region0: #{tpu_custom_call.1}
  #allocation0 [shape = 'u32[]', space=smem, size = 0x4, offset = 0x4, fixed_abs, tag = 'smem constant byte address 0x4 - core index']
  #allocation1 [shape = 'u32[144,128]{1,0:T(1,128)}', space=vmem, size = 0x12000, scoped, tag = 'internal scratch']
  %s0 = inlined_call_operand.hbm [shape: f32[256,256], index: 0, kind: input, shape index: {}]
  %s1 = inlined_call_operand.vmem [shape: f32[1,256], index: 1, kind: input, shape index: {}]
  %s2 = inlined_call_operand.hbm [shape: bf16[256,256], index: 2, kind: output, shape index: {}]
  %s3 = sld [smem:[#allocation0]]
  $region22: #{tpu_custom_call.1} parent=0
    _
  %s5 = ssub.s32 1, %s3
  %s6 = scalar_select 0, %s5, %s3
  $region1: #{tpu_custom_call.1} parent=0
    #allocation2 [shape = 'u8[262144]{0}', space=vmem, size = 0x40000, scoped, tag = 'input window, operand 0, single buffered']
    #allocation3 [shape = 's32[1]{0}', space=sflag, size = 0x4, scoped, tag = 'scoped memory for tpu_custom_call.1']
    #allocation4 [shape = 's32[1]{0}', space=sflag, size = 0x4, scoped, tag = 'scoped memory for tpu_custom_call.1']
    #allocation5 [shape = 'u8[131072]{0}', space=vmem, size = 0x20000, scoped, tag = 'output window, operand 0, single buffered']
    %7 = vsyncpa [#allocation3], 0
    %8 = vsyncpa [#allocation4], 0
    // Predicated region
    $region2: #{tpu_custom_call.1} parent=1 // pred_check
      _
    $region3: #{tpu_custom_call.1} parent=1 // pred_check_branch
      %10 = sbr.rel (0) target = $region5
    $region4: #{tpu_custom_call.1} parent=1 // pred_region
      %s12 = ssub.s32 8192, 8192
      %13 = vsyncadd [#allocation3], %s12
      %s14 = sshll.u32 [#allocation2], 4
      %s15 = int_to_ptr.vmem [resolvable:$true] %s14
      %20 = dma.hbm_to_vmem [thread:$0]  %s0, 8192, %s15, [#allocation3], 256, 256, 16
    $region5: #{tpu_custom_call.1} parent=1 // pred_fallthru
      _
    // Predicated region
    $region6: #{tpu_custom_call.1} parent=1 // pred_check
      _
    $region7: #{tpu_custom_call.1} parent=1 // pred_check_branch
      %22 = sbr.rel (0) target = $region9
    $region8: #{tpu_custom_call.1} parent=1 // pred_region
      _
    $region9: #{tpu_custom_call.1} parent=1 // pred_fallthru
      _
    // Predicated region
    $region10: #{tpu_custom_call.1} parent=1 // pred_check
      _
    $region11: #{tpu_custom_call.1} parent=1 // pred_check_branch
      %24 = sbr.rel (0) target = $region13
    $region12: #{tpu_custom_call.1} parent=1 // pred_region
      %25 = dma.done [#allocation3], 8192
    $region13: #{tpu_custom_call.1} parent=1 // pred_fallthru
      _
    %v26 = vld [vmem:[#allocation2] sm:$0xff]
    %v27 = vld [vmem:[#allocation2 + $0x8] sm:$0xff]
    %v28 = vld [vmem:[#allocation2 + $0x10] sm:$0xff]
    %v29 = vld [vmem:[#allocation2 + $0x18] sm:$0xff]
    %v30 = vld [vmem:[#allocation2 + $0x20] sm:$0xff]
    %v31 = vld [vmem:[#allocation2 + $0x28] sm:$0xff]
    %v32 = vld [vmem:[#allocation2 + $0x30] sm:$0xff]
    %v33 = vld [vmem:[#allocation2 + $0x38] sm:$0xff]
    %v34 = vld [vmem:[#allocation2 + $0x40] sm:$0xff]
    %v35 = vld [vmem:[#allocation2 + $0x48] sm:$0xff]
    %v36 = vld [vmem:[#allocation2 + $0x50] sm:$0xff]
    %v37 = vld [vmem:[#allocation2 + $0x58] sm:$0xff]
    %v38 = vld [vmem:[#allocation2 + $0x60] sm:$0xff]
    %v39 = vld [vmem:[#allocation2 + $0x68] sm:$0xff]
    %v40 = vld [vmem:[#allocation2 + $0x70] sm:$0xff]
    %v41 = vld [vmem:[#allocation2 + $0x78] sm:$0xff]
    %v42 = vld [vmem:[#allocation2 + $0x80] sm:$0xff]
    %v43 = vld [vmem:[#allocation2 + $0x88] sm:$0xff]
    %v44 = vld [vmem:[#allocation2 + $0x90] sm:$0xff]
    %v45 = vld [vmem:[#allocation2 + $0x98] sm:$0xff]
    %v46 = vld [vmem:[#allocation2 + $0xa0] sm:$0xff]
    %v47 = vld [vmem:[#allocation2 + $0xa8] sm:$0xff]
    %v48 = vld [vmem:[#allocation2 + $0xb0] sm:$0xff]
    %v49 = vld [vmem:[#allocation2 + $0xb8] sm:$0xff]
    %v50 = vld [vmem:[#allocation2 + $0xc0] sm:$0xff]
    %v51 = vld [vmem:[#allocation2 + $0xc8] sm:$0xff]
    %v52 = vld [vmem:[#allocation2 + $0xd0] sm:$0xff]
    %v53 = vld [vmem:[#allocation2 + $0xd8] sm:$0xff]
    %v54 = vld [vmem:[#allocation2 + $0xe0] sm:$0xff]
    %v55 = vld [vmem:[#allocation2 + $0xe8] sm:$0xff]
    %v56 = vld [vmem:[#allocation2 + $0xf0] sm:$0xff]
    %v57 = vld [vmem:[#allocation2 + $0xf8] sm:$0xff]
    %v58 = vld [vmem:[#allocation2 + $0x100] sm:$0xff]
    %v59 = vld [vmem:[#allocation2 + $0x108] sm:$0xff]
    %v60 = vld [vmem:[#allocation2 + $0x110] sm:$0xff]
    %v61 = vld [vmem:[#allocation2 + $0x118] sm:$0xff]
    %v62 = vld [vmem:[#allocation2 + $0x120] sm:$0xff]
    %v63 = vld [vmem:[#allocation2 + $0x128] sm:$0xff]
    %v64 = vld [vmem:[#allocation2 + $0x130] sm:$0xff]
    %v65 = vld [vmem:[#allocation2 + $0x138] sm:$0xff]
    %v66 = vld [vmem:[#allocation2 + $0x140] sm:$0xff]
    %v67 = vld [vmem:[#allocation2 + $0x148] sm:$0xff]
    %v68 = vld [vmem:[#allocation2 + $0x150] sm:$0xff]
    %v69 = vld [vmem:[#allocation2 + $0x158] sm:$0xff]
    %v70 = vld [vmem:[#allocation2 + $0x160] sm:$0xff]
    %v71 = vld [vmem:[#allocation2 + $0x168] sm:$0xff]
    %v72 = vld [vmem:[#allocation2 + $0x170] sm:$0xff]
    %v73 = vld [vmem:[#allocation2 + $0x178] sm:$0xff]
    %v74 = vld [vmem:[#allocation2 + $0x180] sm:$0xff]
    %v75 = vld [vmem:[#allocation2 + $0x188] sm:$0xff]
    %v76 = vld [vmem:[#allocation2 + $0x190] sm:$0xff]
    %v77 = vld [vmem:[#allocation2 + $0x198] sm:$0xff]
    %v78 = vld [vmem:[#allocation2 + $0x1a0] sm:$0xff]
    %v79 = vld [vmem:[#allocation2 + $0x1a8] sm:$0xff]
    %v80 = vld [vmem:[#allocation2 + $0x1b0] sm:$0xff]
    %v81 = vld [vmem:[#allocation2 + $0x1b8] sm:$0xff]
    %v82 = vld [vmem:[#allocation2 + $0x1c0] sm:$0xff]
    %v83 = vld [vmem:[#allocation2 + $0x1c8] sm:$0xff]
    %v84 = vld [vmem:[#allocation2 + $0x1d0] sm:$0xff]
    %v85 = vld [vmem:[#allocation2 + $0x1d8] sm:$0xff]
    %v86 = vld [vmem:[#allocation2 + $0x1e0] sm:$0xff]
    %v87 = vld [vmem:[#allocation2 + $0x1e8] sm:$0xff]
    %v88 = vld [vmem:[#allocation2 + $0x1f0] sm:$0xff]
    %v89 = vld [vmem:[#allocation2 + $0x1f8] sm:$0xff]
    %v90 = vmul.f32 %v26, %v26
    %v91 = vmul.f32 %v27, %v27
    %v92 = vmul.f32 %v28, %v28
    %v93 = vmul.f32 %v29, %v29
    %v94 = vmul.f32 %v30, %v30
    %v95 = vmul.f32 %v31, %v31
    %v96 = vmul.f32 %v32, %v32
    %v97 = vmul.f32 %v33, %v33
    %v98 = vmul.f32 %v34, %v34
    %v99 = vmul.f32 %v35, %v35
    %v100 = vmul.f32 %v36, %v36
    %v101 = vmul.f32 %v37, %v37
    %v102 = vmul.f32 %v38, %v38
    %v103 = vmul.f32 %v39, %v39
    %v104 = vmul.f32 %v40, %v40
    %v105 = vmul.f32 %v41, %v41
    %v106 = vmul.f32 %v42, %v42
    %v107 = vmul.f32 %v43, %v43
    %v108 = vmul.f32 %v44, %v44
    %v109 = vmul.f32 %v45, %v45
    %v110 = vmul.f32 %v46, %v46
    %v111 = vmul.f32 %v47, %v47
    %v112 = vmul.f32 %v48, %v48
    %v113 = vmul.f32 %v49, %v49
    %v114 = vmul.f32 %v50, %v50
    %v115 = vmul.f32 %v51, %v51
    %v116 = vmul.f32 %v52, %v52
    %v117 = vmul.f32 %v53, %v53
    %v118 = vmul.f32 %v54, %v54
    %v119 = vmul.f32 %v55, %v55
    %v120 = vmul.f32 %v56, %v56
    %v121 = vmul.f32 %v57, %v57
    %v122 = vmul.f32 %v58, %v58
    %v123 = vmul.f32 %v59, %v59
    %v124 = vmul.f32 %v60, %v60
    %v125 = vmul.f32 %v61, %v61
    %v126 = vmul.f32 %v62, %v62
    %v127 = vmul.f32 %v63, %v63
    %v128 = vmul.f32 %v64, %v64
    %v129 = vmul.f32 %v65, %v65
    %v130 = vmul.f32 %v66, %v66
    %v131 = vmul.f32 %v67, %v67
    %v132 = vmul.f32 %v68, %v68
    %v133 = vmul.f32 %v69, %v69
    %v134 = vmul.f32 %v70, %v70
    %v135 = vmul.f32 %v71, %v71
    %v136 = vmul.f32 %v72, %v72
    %v137 = vmul.f32 %v73, %v73
    %v138 = vmul.f32 %v74, %v74
    %v139 = vmul.f32 %v75, %v75
    %v140 = vmul.f32 %v76, %v76
    %v141 = vmul.f32 %v77, %v77
    %v142 = vmul.f32 %v78, %v78
    %v143 = vmul.f32 %v79, %v79
    %v144 = vmul.f32 %v80, %v80
    %v145 = vmul.f32 %v81, %v81
    %v146 = vmul.f32 %v82, %v82
    %v147 = vmul.f32 %v83, %v83
    %v148 = vmul.f32 %v84, %v84
    %v149 = vmul.f32 %v85, %v85
    %v150 = vmul.f32 %v86, %v86
    %v151 = vmul.f32 %v87, %v87
    %v152 = vmul.f32 %v88, %v88
    %v153 = vmul.f32 %v89, %v89
    %v154 = vadd.f32 %v90, %v91
    %155 = vadd.xlane.f32.xlu0 %v154
    %v156 = vpop.xlane.xlu0 %155
    %v157 = vadd.f32 %v92, %v93
    %158 = vadd.xlane.f32.xlu0 %v157
    %v159 = vpop.xlane.xlu0 %158
    %v160 = vadd.f32 %v94, %v95
    %161 = vadd.xlane.f32.xlu0 %v160
    %v162 = vpop.xlane.xlu0 %161
    %v163 = vadd.f32 %v96, %v97
    %164 = vadd.xlane.f32.xlu0 %v163
    %v165 = vpop.xlane.xlu0 %164
    %v166 = vadd.f32 %v98, %v99
    %167 = vadd.xlane.f32.xlu0 %v166
    %v168 = vpop.xlane.xlu0 %167
    %v169 = vadd.f32 %v100, %v101
    %170 = vadd.xlane.f32.xlu0 %v169
    %v171 = vpop.xlane.xlu0 %170
    %v172 = vadd.f32 %v102, %v103
    %173 = vadd.xlane.f32.xlu0 %v172
    %v174 = vpop.xlane.xlu0 %173
    %v175 = vadd.f32 %v104, %v105
    %176 = vadd.xlane.f32.xlu0 %v175
    %v177 = vpop.xlane.xlu0 %176
    %v178 = vadd.f32 %v106, %v107
    %179 = vadd.xlane.f32.xlu0 %v178
    %v180 = vpop.xlane.xlu0 %179
    %v181 = vadd.f32 %v108, %v109
    %182 = vadd.xlane.f32.xlu0 %v181
    %v183 = vpop.xlane.xlu0 %182
    %v184 = vadd.f32 %v110, %v111
    %185 = vadd.xlane.f32.xlu0 %v184
    %v186 = vpop.xlane.xlu0 %185
    %v187 = vadd.f32 %v112, %v113
    %188 = vadd.xlane.f32.xlu0 %v187
    %v189 = vpop.xlane.xlu0 %188
    %v190 = vadd.f32 %v114, %v115
    %191 = vadd.xlane.f32.xlu0 %v190
    %v192 = vpop.xlane.xlu0 %191
    %v193 = vadd.f32 %v116, %v117
    %194 = vadd.xlane.f32.xlu0 %v193
    %v195 = vpop.xlane.xlu0 %194
    %v196 = vadd.f32 %v118, %v119
    %197 = vadd.xlane.f32.xlu0 %v196
    %v198 = vpop.xlane.xlu0 %197
    %v199 = vadd.f32 %v120, %v121
    %200 = vadd.xlane.f32.xlu0 %v199
    %v201 = vpop.xlane.xlu0 %200
    %v202 = vadd.f32 %v122, %v123
    %203 = vadd.xlane.f32.xlu0 %v202
    %v204 = vpop.xlane.xlu0 %203
    %v205 = vadd.f32 %v124, %v125
    %206 = vadd.xlane.f32.xlu0 %v205
    %v207 = vpop.xlane.xlu0 %206
    %v208 = vadd.f32 %v126, %v127
    %209 = vadd.xlane.f32.xlu0 %v208
    %v210 = vpop.xlane.xlu0 %209
    %v211 = vadd.f32 %v128, %v129
    %212 = vadd.xlane.f32.xlu0 %v211
    %v213 = vpop.xlane.xlu0 %212
    %v214 = vadd.f32 %v130, %v131
    %215 = vadd.xlane.f32.xlu0 %v214
    %v216 = vpop.xlane.xlu0 %215
    %v217 = vadd.f32 %v132, %v133
    %218 = vadd.xlane.f32.xlu0 %v217
    %v219 = vpop.xlane.xlu0 %218
    %v220 = vadd.f32 %v134, %v135
    %221 = vadd.xlane.f32.xlu0 %v220
    %v222 = vpop.xlane.xlu0 %221
    %v223 = vadd.f32 %v136, %v137
    %224 = vadd.xlane.f32.xlu0 %v223
    %v225 = vpop.xlane.xlu0 %224
    %v226 = vadd.f32 %v138, %v139
    %227 = vadd.xlane.f32.xlu0 %v226
    %v228 = vpop.xlane.xlu0 %227
    %v229 = vadd.f32 %v140, %v141
    %230 = vadd.xlane.f32.xlu0 %v229
    %v231 = vpop.xlane.xlu0 %230
    %v232 = vadd.f32 %v142, %v143
    %233 = vadd.xlane.f32.xlu0 %v232
    %v234 = vpop.xlane.xlu0 %233
    %v235 = vadd.f32 %v144, %v145
    %236 = vadd.xlane.f32.xlu0 %v235
    %v237 = vpop.xlane.xlu0 %236
    %v238 = vadd.f32 %v146, %v147
    %239 = vadd.xlane.f32.xlu0 %v238
    %v240 = vpop.xlane.xlu0 %239
    %v241 = vadd.f32 %v148, %v149
    %242 = vadd.xlane.f32.xlu0 %v241
    %v243 = vpop.xlane.xlu0 %242
    %v244 = vadd.f32 %v150, %v151
    %245 = vadd.xlane.f32.xlu0 %v244
    %v246 = vpop.xlane.xlu0 %245
    %v247 = vadd.f32 %v152, %v153
    %248 = vadd.xlane.f32.xlu0 %v247
    %v249 = vpop.xlane.xlu0 %248
    %v250 = vrcp.pop 256.0
    %v251 = vmul.f32 %v156, %v250
    %v252 = vmul.f32 %v159, %v250
    %v253 = vmul.f32 %v162, %v250
    %v254 = vmul.f32 %v165, %v250
    %v255 = vmul.f32 %v168, %v250
    %v256 = vmul.f32 %v171, %v250
    %v257 = vmul.f32 %v174, %v250
    %v258 = vmul.f32 %v177, %v250
    %v259 = vmul.f32 %v180, %v250
    %v260 = vmul.f32 %v183, %v250
    %v261 = vmul.f32 %v186, %v250
    %v262 = vmul.f32 %v189, %v250
    %v263 = vmul.f32 %v192, %v250
    %v264 = vmul.f32 %v195, %v250
    %v265 = vmul.f32 %v198, %v250
    %v266 = vmul.f32 %v201, %v250
    %v267 = vmul.f32 %v204, %v250
    %v268 = vmul.f32 %v207, %v250
    %v269 = vmul.f32 %v210, %v250
    %v270 = vmul.f32 %v213, %v250
    %v271 = vmul.f32 %v216, %v250
    %v272 = vmul.f32 %v219, %v250
    %v273 = vmul.f32 %v222, %v250
    %v274 = vmul.f32 %v225, %v250
    %v275 = vmul.f32 %v228, %v250
    %v276 = vmul.f32 %v231, %v250
    %v277 = vmul.f32 %v234, %v250
    %v278 = vmul.f32 %v237, %v250
    %v279 = vmul.f32 %v240, %v250
    %v280 = vmul.f32 %v243, %v250
    %v281 = vmul.f32 %v246, %v250
    %v282 = vmul.f32 %v249, %v250
    %v283 = vadd.f32 %v251, 1e-06
    %v284 = vadd.f32 %v252, 1e-06
    %v285 = vadd.f32 %v253, 1e-06
    %v286 = vadd.f32 %v254, 1e-06
    %v287 = vadd.f32 %v255, 1e-06
    %v288 = vadd.f32 %v256, 1e-06
    %v289 = vadd.f32 %v257, 1e-06
    %v290 = vadd.f32 %v258, 1e-06
    %v291 = vadd.f32 %v259, 1e-06
    %v292 = vadd.f32 %v260, 1e-06
    %v293 = vadd.f32 %v261, 1e-06
    %v294 = vadd.f32 %v262, 1e-06
    %v295 = vadd.f32 %v263, 1e-06
    %v296 = vadd.f32 %v264, 1e-06
    %v297 = vadd.f32 %v265, 1e-06
    %v298 = vadd.f32 %v266, 1e-06
    %v299 = vadd.f32 %v267, 1e-06
    %v300 = vadd.f32 %v268, 1e-06
    %v301 = vadd.f32 %v269, 1e-06
    %v302 = vadd.f32 %v270, 1e-06
    %v303 = vadd.f32 %v271, 1e-06
    %v304 = vadd.f32 %v272, 1e-06
    %v305 = vadd.f32 %v273, 1e-06
    %v306 = vadd.f32 %v274, 1e-06
    %v307 = vadd.f32 %v275, 1e-06
    %v308 = vadd.f32 %v276, 1e-06
    %v309 = vadd.f32 %v277, 1e-06
    %v310 = vadd.f32 %v278, 1e-06
    %v311 = vadd.f32 %v279, 1e-06
    %v312 = vadd.f32 %v280, 1e-06
    %v313 = vadd.f32 %v281, 1e-06
    %v314 = vadd.f32 %v282, 1e-06
    %v315 = vrsqrt.pop %v283
    %v316 = vrsqrt.pop %v284
    %v317 = vrsqrt.pop %v285
    %v318 = vrsqrt.pop %v286
    %v319 = vrsqrt.pop %v287
    %v320 = vrsqrt.pop %v288
    %v321 = vrsqrt.pop %v289
    %v322 = vrsqrt.pop %v290
    %v323 = vrsqrt.pop %v291
    %v324 = vrsqrt.pop %v292
    %v325 = vrsqrt.pop %v293
    %v326 = vrsqrt.pop %v294
    %v327 = vrsqrt.pop %v295
    %v328 = vrsqrt.pop %v296
    %v329 = vrsqrt.pop %v297
    %v330 = vrsqrt.pop %v298
    %v331 = vrsqrt.pop %v299
    %v332 = vrsqrt.pop %v300
    %v333 = vrsqrt.pop %v301
    %v334 = vrsqrt.pop %v302
    %v335 = vrsqrt.pop %v303
    %v336 = vrsqrt.pop %v304
    %v337 = vrsqrt.pop %v305
    %v338 = vrsqrt.pop %v306
    %v339 = vrsqrt.pop %v307
    %v340 = vrsqrt.pop %v308
    %v341 = vrsqrt.pop %v309
    %v342 = vrsqrt.pop %v310
    %v343 = vrsqrt.pop %v311
    %v344 = vrsqrt.pop %v312
    %v345 = vrsqrt.pop %v313
    %v346 = vrsqrt.pop %v314
    %v347 = vmul.f32 %v26, %v315
    %v348 = vmul.f32 %v27, %v315
    %v349 = vmul.f32 %v28, %v316
    %v350 = vmul.f32 %v29, %v316
    %v351 = vmul.f32 %v30, %v317
    %v352 = vmul.f32 %v31, %v317
    %v353 = vmul.f32 %v32, %v318
    %v354 = vmul.f32 %v33, %v318
    %v355 = vmul.f32 %v34, %v319
    %v356 = vmul.f32 %v35, %v319
    %v357 = vmul.f32 %v36, %v320
    %v358 = vmul.f32 %v37, %v320
    %v359 = vmul.f32 %v38, %v321
    %v360 = vmul.f32 %v39, %v321
    %v361 = vmul.f32 %v40, %v322
    %v362 = vmul.f32 %v41, %v322
    %v363 = vmul.f32 %v42, %v323
    %v364 = vmul.f32 %v43, %v323
    %v365 = vmul.f32 %v44, %v324
    %v366 = vmul.f32 %v45, %v324
    %v367 = vmul.f32 %v46, %v325
    %v368 = vmul.f32 %v47, %v325
    %v369 = vmul.f32 %v48, %v326
    %v370 = vmul.f32 %v49, %v326
    %v371 = vmul.f32 %v50, %v327
    %v372 = vmul.f32 %v51, %v327
    %v373 = vmul.f32 %v52, %v328
    %v374 = vmul.f32 %v53, %v328
    %v375 = vmul.f32 %v54, %v329
    %v376 = vmul.f32 %v55, %v329
    %v377 = vmul.f32 %v56, %v330
    %v378 = vmul.f32 %v57, %v330
    %v379 = vmul.f32 %v58, %v331
    %v380 = vmul.f32 %v59, %v331
    %v381 = vmul.f32 %v60, %v332
    %v382 = vmul.f32 %v61, %v332
    %v383 = vmul.f32 %v62, %v333
    %v384 = vmul.f32 %v63, %v333
    %v385 = vmul.f32 %v64, %v334
    %v386 = vmul.f32 %v65, %v334
    %v387 = vmul.f32 %v66, %v335
    %v388 = vmul.f32 %v67, %v335
    %v389 = vmul.f32 %v68, %v336
    %v390 = vmul.f32 %v69, %v336
    %v391 = vmul.f32 %v70, %v337
    %v392 = vmul.f32 %v71, %v337
    %v393 = vmul.f32 %v72, %v338
    %v394 = vmul.f32 %v73, %v338
    %v395 = vmul.f32 %v74, %v339
    %v396 = vmul.f32 %v75, %v339
    %v397 = vmul.f32 %v76, %v340
    %v398 = vmul.f32 %v77, %v340
    %v399 = vmul.f32 %v78, %v341
    %v400 = vmul.f32 %v79, %v341
    %v401 = vmul.f32 %v80, %v342
    %v402 = vmul.f32 %v81, %v342
    %v403 = vmul.f32 %v82, %v343
    %v404 = vmul.f32 %v83, %v343
    %v405 = vmul.f32 %v84, %v344
    %v406 = vmul.f32 %v85, %v344
    %v407 = vmul.f32 %v86, %v345
    %v408 = vmul.f32 %v87, %v345
    %v409 = vmul.f32 %v88, %v346
    %v410 = vmul.f32 %v89, %v346
    %v411 = vld [vmem:[%s1] sm:$0x3]
    %v413 = vlaneseq
    %v414 = vshrl.u32 %v413, 7
    %v415 = vsub.s32 0, %v414
    %v416 = vrot.slane %v411, %v415
    %v417 = vlaneseq
    %v418 = vshrl.u32 %v417, 7
    %v419 = vsub.s32 1, %v418
    %v420 = vrot.slane %v411, %v419
    %v423 = vmul.f32 %v347, %v416
    %v424 = vmul.f32 %v348, %v420
    %v425 = vmul.f32 %v349, %v416
    %v426 = vmul.f32 %v350, %v420
    %v427 = vmul.f32 %v351, %v416
    %v428 = vmul.f32 %v352, %v420
    %v429 = vmul.f32 %v353, %v416
    %v430 = vmul.f32 %v354, %v420
    %v431 = vmul.f32 %v355, %v416
    %v432 = vmul.f32 %v356, %v420
    %v433 = vmul.f32 %v357, %v416
    %v434 = vmul.f32 %v358, %v420
    %v435 = vmul.f32 %v359, %v416
    %v436 = vmul.f32 %v360, %v420
    %v437 = vmul.f32 %v361, %v416
    %v438 = vmul.f32 %v362, %v420
    %v439 = vmul.f32 %v363, %v416
    %v440 = vmul.f32 %v364, %v420
    %v441 = vmul.f32 %v365, %v416
    %v442 = vmul.f32 %v366, %v420
    %v443 = vmul.f32 %v367, %v416
    %v444 = vmul.f32 %v368, %v420
    %v445 = vmul.f32 %v369, %v416
    %v446 = vmul.f32 %v370, %v420
    %v447 = vmul.f32 %v371, %v416
    %v448 = vmul.f32 %v372, %v420
    %v449 = vmul.f32 %v373, %v416
    %v450 = vmul.f32 %v374, %v420
    %v451 = vmul.f32 %v375, %v416
    %v452 = vmul.f32 %v376, %v420
    %v453 = vmul.f32 %v377, %v416
    %v454 = vmul.f32 %v378, %v420
    %v455 = vmul.f32 %v379, %v416
    %v456 = vmul.f32 %v380, %v420
    %v457 = vmul.f32 %v381, %v416
    %v458 = vmul.f32 %v382, %v420
    %v459 = vmul.f32 %v383, %v416
    %v460 = vmul.f32 %v384, %v420
    %v461 = vmul.f32 %v385, %v416
    %v462 = vmul.f32 %v386, %v420
    %v463 = vmul.f32 %v387, %v416
    %v464 = vmul.f32 %v388, %v420
    %v465 = vmul.f32 %v389, %v416
    %v466 = vmul.f32 %v390, %v420
    %v467 = vmul.f32 %v391, %v416
    %v468 = vmul.f32 %v392, %v420
    %v469 = vmul.f32 %v393, %v416
    %v470 = vmul.f32 %v394, %v420
    %v471 = vmul.f32 %v395, %v416
    %v472 = vmul.f32 %v396, %v420
    %v473 = vmul.f32 %v397, %v416
    %v474 = vmul.f32 %v398, %v420
    %v475 = vmul.f32 %v399, %v416
    %v476 = vmul.f32 %v400, %v420
    %v477 = vmul.f32 %v401, %v416
    %v478 = vmul.f32 %v402, %v420
    %v479 = vmul.f32 %v403, %v416
    %v480 = vmul.f32 %v404, %v420
    %v481 = vmul.f32 %v405, %v416
    %v482 = vmul.f32 %v406, %v420
    %v483 = vmul.f32 %v407, %v416
    %v484 = vmul.f32 %v408, %v420
    %v485 = vmul.f32 %v409, %v416
    %v486 = vmul.f32 %v410, %v420
    %v487 = vpack.c.bf16 %v425, %v423
    %v488 = vpack.c.bf16 %v426, %v424
    %v489 = vpack.c.bf16 %v429, %v427
    %v490 = vpack.c.bf16 %v430, %v428
    %v491 = vpack.c.bf16 %v433, %v431
    %v492 = vpack.c.bf16 %v434, %v432
    %v493 = vpack.c.bf16 %v437, %v435
    %v494 = vpack.c.bf16 %v438, %v436
    %v495 = vpack.c.bf16 %v441, %v439
    %v496 = vpack.c.bf16 %v442, %v440
    %v497 = vpack.c.bf16 %v445, %v443
    %v498 = vpack.c.bf16 %v446, %v444
    %v499 = vpack.c.bf16 %v449, %v447
    %v500 = vpack.c.bf16 %v450, %v448
    %v501 = vpack.c.bf16 %v453, %v451
    %v502 = vpack.c.bf16 %v454, %v452
    %v503 = vpack.c.bf16 %v457, %v455
    %v504 = vpack.c.bf16 %v458, %v456
    %v505 = vpack.c.bf16 %v461, %v459
    %v506 = vpack.c.bf16 %v462, %v460
    %v507 = vpack.c.bf16 %v465, %v463
    %v508 = vpack.c.bf16 %v466, %v464
    %v509 = vpack.c.bf16 %v469, %v467
    %v510 = vpack.c.bf16 %v470, %v468
    %v511 = vpack.c.bf16 %v473, %v471
    %v512 = vpack.c.bf16 %v474, %v472
    %v513 = vpack.c.bf16 %v477, %v475
    %v514 = vpack.c.bf16 %v478, %v476
    %v515 = vpack.c.bf16 %v481, %v479
    %v516 = vpack.c.bf16 %v482, %v480
    %v517 = vpack.c.bf16 %v485, %v483
    %v518 = vpack.c.bf16 %v486, %v484
    %v551 = vunpack.c.l.b16 %v487
    %v552 = vunpack.c.l.b16 %v488
    %v553 = vunpack.c.h.b16 %v487
    %v554 = vunpack.c.h.b16 %v488
    %v555 = vunpack.c.l.b16 %v489
    %v556 = vunpack.c.l.b16 %v490
    %v557 = vunpack.c.h.b16 %v489
    %v558 = vunpack.c.h.b16 %v490
    %v559 = vunpack.c.l.b16 %v491
    %v560 = vunpack.c.l.b16 %v492
    %v561 = vunpack.c.h.b16 %v491
    %v562 = vunpack.c.h.b16 %v492
    %v563 = vunpack.c.l.b16 %v493
    %v564 = vunpack.c.l.b16 %v494
    %v565 = vunpack.c.h.b16 %v493
    %v566 = vunpack.c.h.b16 %v494
    %v567 = vunpack.c.l.b16 %v495
    %v568 = vunpack.c.l.b16 %v496
    %v569 = vunpack.c.h.b16 %v495
    %v570 = vunpack.c.h.b16 %v496
    %v571 = vunpack.c.l.b16 %v497
    %v572 = vunpack.c.l.b16 %v498
    %v573 = vunpack.c.h.b16 %v497
    %v574 = vunpack.c.h.b16 %v498
    %v575 = vunpack.c.l.b16 %v499
    %v576 = vunpack.c.l.b16 %v500
    %v577 = vunpack.c.h.b16 %v499
    %v578 = vunpack.c.h.b16 %v500
    %v579 = vunpack.c.l.b16 %v501
    %v580 = vunpack.c.l.b16 %v502
    %v581 = vunpack.c.h.b16 %v501
    %v582 = vunpack.c.h.b16 %v502
    %v583 = vunpack.c.l.b16 %v503
    %v584 = vunpack.c.l.b16 %v504
    %v585 = vunpack.c.h.b16 %v503
    %v586 = vunpack.c.h.b16 %v504
    %v587 = vunpack.c.l.b16 %v505
    %v588 = vunpack.c.l.b16 %v506
    %v589 = vunpack.c.h.b16 %v505
    %v590 = vunpack.c.h.b16 %v506
    %v591 = vunpack.c.l.b16 %v507
    %v592 = vunpack.c.l.b16 %v508
    %v593 = vunpack.c.h.b16 %v507
    %v594 = vunpack.c.h.b16 %v508
    %v595 = vunpack.c.l.b16 %v509
    %v596 = vunpack.c.l.b16 %v510
    %v597 = vunpack.c.h.b16 %v509
    %v598 = vunpack.c.h.b16 %v510
    %v599 = vunpack.c.l.b16 %v511
    %v600 = vunpack.c.l.b16 %v512
    %v601 = vunpack.c.h.b16 %v511
    %v602 = vunpack.c.h.b16 %v512
    %v603 = vunpack.c.l.b16 %v513
    %v604 = vunpack.c.l.b16 %v514
    %v605 = vunpack.c.h.b16 %v513
    %v606 = vunpack.c.h.b16 %v514
    %v607 = vunpack.c.l.b16 %v515
    %v608 = vunpack.c.l.b16 %v516
    %v609 = vunpack.c.h.b16 %v515
    %v610 = vunpack.c.h.b16 %v516
    %v611 = vunpack.c.l.b16 %v517
    %v612 = vunpack.c.l.b16 %v518
    %v613 = vunpack.c.h.b16 %v517
    %v614 = vunpack.c.h.b16 %v518
    %v615 = vpack.c.b16 %v552, %v551
    %v616 = vpack.c.b16 %v554, %v553
    %v617 = vpack.c.b16 %v556, %v555
    %v618 = vpack.c.b16 %v558, %v557
    %v619 = vpack.c.b16 %v560, %v559
    %v620 = vpack.c.b16 %v562, %v561
    %v621 = vpack.c.b16 %v564, %v563
    %v622 = vpack.c.b16 %v566, %v565
    %v623 = vpack.c.b16 %v568, %v567
    %v624 = vpack.c.b16 %v570, %v569
    %v625 = vpack.c.b16 %v572, %v571
    %v626 = vpack.c.b16 %v574, %v573
    %v627 = vpack.c.b16 %v576, %v575
    %v628 = vpack.c.b16 %v578, %v577
    %v629 = vpack.c.b16 %v580, %v579
    %v630 = vpack.c.b16 %v582, %v581
    %v631 = vpack.c.b16 %v584, %v583
    %v632 = vpack.c.b16 %v586, %v585
    %v633 = vpack.c.b16 %v588, %v587
    %v634 = vpack.c.b16 %v590, %v589
    %v635 = vpack.c.b16 %v592, %v591
    %v636 = vpack.c.b16 %v594, %v593
    %v637 = vpack.c.b16 %v596, %v595
    %v638 = vpack.c.b16 %v598, %v597
    %v639 = vpack.c.b16 %v600, %v599
    %v640 = vpack.c.b16 %v602, %v601
    %v641 = vpack.c.b16 %v604, %v603
    %v642 = vpack.c.b16 %v606, %v605
    %v643 = vpack.c.b16 %v608, %v607
    %v644 = vpack.c.b16 %v610, %v609
    %v645 = vpack.c.b16 %v612, %v611
    %v646 = vpack.c.b16 %v614, %v613
    %679 = vst [vmem:[#allocation5] sm:$0xff] %v615
    %680 = vst [vmem:[#allocation5 + $0x8] sm:$0xff] %v616
    %681 = vst [vmem:[#allocation5 + $0x10] sm:$0xff] %v617
    %682 = vst [vmem:[#allocation5 + $0x18] sm:$0xff] %v618
    %683 = vst [vmem:[#allocation5 + $0x20] sm:$0xff] %v619
    %684 = vst [vmem:[#allocation5 + $0x28] sm:$0xff] %v620
    %685 = vst [vmem:[#allocation5 + $0x30] sm:$0xff] %v621
    %686 = vst [vmem:[#allocation5 + $0x38] sm:$0xff] %v622
    %687 = vst [vmem:[#allocation5 + $0x40] sm:$0xff] %v623
    %688 = vst [vmem:[#allocation5 + $0x48] sm:$0xff] %v624
    %689 = vst [vmem:[#allocation5 + $0x50] sm:$0xff] %v625
    %690 = vst [vmem:[#allocation5 + $0x58] sm:$0xff] %v626
    %691 = vst [vmem:[#allocation5 + $0x60] sm:$0xff] %v627
    %692 = vst [vmem:[#allocation5 + $0x68] sm:$0xff] %v628
    %693 = vst [vmem:[#allocation5 + $0x70] sm:$0xff] %v629
    %694 = vst [vmem:[#allocation5 + $0x78] sm:$0xff] %v630
    %695 = vst [vmem:[#allocation5 + $0x80] sm:$0xff] %v631
    %696 = vst [vmem:[#allocation5 + $0x88] sm:$0xff] %v632
    %697 = vst [vmem:[#allocation5 + $0x90] sm:$0xff] %v633
    %698 = vst [vmem:[#allocation5 + $0x98] sm:$0xff] %v634
    %699 = vst [vmem:[#allocation5 + $0xa0] sm:$0xff] %v635
    %700 = vst [vmem:[#allocation5 + $0xa8] sm:$0xff] %v636
    %701 = vst [vmem:[#allocation5 + $0xb0] sm:$0xff] %v637
    %702 = vst [vmem:[#allocation5 + $0xb8] sm:$0xff] %v638
    %703 = vst [vmem:[#allocation5 + $0xc0] sm:$0xff] %v639
    %704 = vst [vmem:[#allocation5 + $0xc8] sm:$0xff] %v640
    %705 = vst [vmem:[#allocation5 + $0xd0] sm:$0xff] %v641
    %706 = vst [vmem:[#allocation5 + $0xd8] sm:$0xff] %v642
    %707 = vst [vmem:[#allocation5 + $0xe0] sm:$0xff] %v643
    %708 = vst [vmem:[#allocation5 + $0xe8] sm:$0xff] %v644
    %709 = vst [vmem:[#allocation5 + $0xf0] sm:$0xff] %v645
    %710 = vst [vmem:[#allocation5 + $0xf8] sm:$0xff] %v646
    // Predicated region
    $region14: #{tpu_custom_call.1} parent=1 // pred_check
      _
    $region15: #{tpu_custom_call.1} parent=1 // pred_check_branch
      %712 = sbr.rel (0) target = $region17
    $region16: #{tpu_custom_call.1} parent=1 // pred_region
      %s714 = ssub.s32 4096, 4096
      %715 = vsyncadd [#allocation4], %s714
      %s716 = sshll.u32 [#allocation5], 4
      %s717 = int_to_ptr.vmem [resolvable:$true] %s716
      %722 = dma.vmem_to_hbm [thread:$0]  %s717, 4096, %s2, [#allocation4], 128, 128, 8
    $region17: #{tpu_custom_call.1} parent=1 // pred_fallthru
      _
    // Predicated region
    $region18: #{tpu_custom_call.1} parent=1 // pred_check
      _
    $region19: #{tpu_custom_call.1} parent=1 // pred_check_branch
      %724 = sbr.rel (0) target = $region21
    $region20: #{tpu_custom_call.1} parent=1 // pred_region
      %725 = dma.done [#allocation4], 4096
    $region21: #{tpu_custom_call.1} parent=1 // pred_fallthru
      _
    %726 = vsyncpa [#allocation3], 1
    %727 = vsyncpa [#allocation4], 1

</llo_original>
